<compile_context>
chip_gen: v7x
topology: tpu7x:2x2x1
jax: 0.10.0
libtpu: 0.0.40
codegen_flags: <defaults>
</compile_context>

<pallas_src>
import jax
import jax.numpy as jnp
from jax.experimental import pallas as pl
from jax.experimental.pallas import tpu as pltpu


def _round_up(a, b):
    return (a + b - 1) // b * b


def _hw_config():
    """Per-generation (VMEM budget, TM target, TK target)."""
    try:
        kind = jax.devices()[0].device_kind.lower()
    except Exception:
        kind = ""
    if "v7" in kind:
        # v7x: 64 MiB physical VMEM per TensorCore -> stay well under.
        return 48 * 1024 * 1024, 256, 512
    # v5e / v6e: 128 MiB physical VMEM.
    return 96 * 1024 * 1024, 512, 1024


def _pick_tile(npad, target):
    """Largest multiple of 128 that divides npad and is <= target."""
    best = 128
    d = 128
    while d <= min(npad, target):
        if npad % d == 0:
            best = d
        d += 128
    return best


def _agg_vmem_bytes(tm, tk, hp, budget):
    bf16, f32 = 2, 4
    need = (2 * tm * tk * bf16        # adj blocks (double-buffered)
            + 2 * tk * hp * bf16      # xW blocks
            + 2 * tm * hp * f32       # root blocks
            + 2 * tm * hp * bf16      # output blocks
            + tm * hp * f32)          # accumulator scratch
    return int(min(max(2 * need, 4 * 1024 * 1024), budget))


# ---------------------------------------------------------------------------
# Per-layer input projection:  xW = x @ W_l   (bf16),  root = x @ W_r + b  (f32)
# ---------------------------------------------------------------------------
def _input_proj_kernel(x_ref, wl_ref, wr_ref, b_ref, xw_ref, root_ref):
    x = x_ref[...]
    xw_ref[...] = jnp.dot(x, wl_ref[...],
                          preferred_element_type=jnp.float32).astype(xw_ref.dtype)
    root_ref[...] = (jnp.dot(x, wr_ref[...], preferred_element_type=jnp.float32)
                     + b_ref[...])


def input_proj(x, wl, wr, b, *, tm):
    npad, fin = x.shape
    hp = wl.shape[1]
    return pl.pallas_call(
        _input_proj_kernel,
        out_shape=(jax.ShapeDtypeStruct((npad, hp), jnp.bfloat16),
                   jax.ShapeDtypeStruct((npad, hp), jnp.float32)),
        grid_spec=pltpu.PrefetchScalarGridSpec(
            num_scalar_prefetch=0,
            grid=(npad // tm,),
            in_specs=[
                pl.BlockSpec((tm, fin), lambda i: (i, 0)),    # x rows
                pl.BlockSpec((fin, hp), lambda i: (0, 0)),    # W_l (resident)
                pl.BlockSpec((fin, hp), lambda i: (0, 0)),    # W_r (resident)
                pl.BlockSpec((1, hp), lambda i: (0, 0)),      # bias
            ],
            out_specs=[
                pl.BlockSpec((tm, hp), lambda i: (i, 0)),     # xW (bf16)
                pl.BlockSpec((tm, hp), lambda i: (i, 0)),     # root (f32)
            ],
        ),
        compiler_params=pltpu.CompilerParams(
            dimension_semantics=("parallel",)),
    )(x, wl, wr, b)


# ---------------------------------------------------------------------------
# SAGE aggregation:  h = relu(adj @ xW + root)
# ---------------------------------------------------------------------------
def _sage_agg_kernel(adj_ref, xw_ref, root_ref, out_ref, acc_ref):
    k = pl.program_id(1)

    @pl.when(k == 0)
    def _():
        acc_ref[...] = jnp.zeros_like(acc_ref)

    # Mean-normalized neighbor aggregation (bf16 inputs, f32 accumulate).
    acc_ref[...] += jnp.dot(adj_ref[...], xw_ref[...],
                            preferred_element_type=jnp.float32)

    @pl.when(k == pl.num_programs(1) - 1)
    def _():
        out_ref[...] = jnp.maximum(acc_ref[...] + root_ref[...],
                                   0.0).astype(out_ref.dtype)


def sage_agg(adj, xw, root, *, tm, tk, vmem_budget):
    npad = adj.shape[0]
    hp = xw.shape[1]
    grid = (npad // tm, npad // tk)

    flops = 2 * npad * npad * hp
    bytes_accessed = (adj.size * 2 + (npad // tm) * xw.size * 2
                      + root.size * 4 + npad * hp * 2)

    return pl.pallas_call(
        _sage_agg_kernel,
        out_shape=jax.ShapeDtypeStruct((npad, hp), jnp.bfloat16),
        grid_spec=pltpu.PrefetchScalarGridSpec(
            num_scalar_prefetch=0,
            grid=grid,
            in_specs=[
                pl.BlockSpec((tm, tk), lambda i, k: (i, k)),   # adj tile
                pl.BlockSpec((tk, hp), lambda i, k: (k, 0)),   # xW rows (reduce)
                pl.BlockSpec((tm, hp), lambda i, k: (i, 0)),   # root rows
            ],
            out_specs=pl.BlockSpec((tm, hp), lambda i, k: (i, 0)),
            scratch_shapes=[pltpu.VMEM((tm, hp), jnp.float32)],
        ),
        compiler_params=pltpu.CompilerParams(
            dimension_semantics=("parallel", "arbitrary"),
            vmem_limit_bytes=_agg_vmem_bytes(tm, tk, hp, vmem_budget),
        ),
        cost_estimate=pl.CostEstimate(flops=flops, transcendentals=0,
                                      bytes_accessed=bytes_accessed),
    )(adj, xw, root)


# ---------------------------------------------------------------------------
# AttentionalAggregation + lin1 + (eval) dropout + lin2, tiled over node blocks
# ---------------------------------------------------------------------------
def _pool_head_kernel(h_ref, mem_ref, gw_ref, gb_ref,
                      l1w_ref, l1b_ref, l2w_ref, l2b_ref, out_ref,
                      m_sc, l_sc, acc_sc):
    n = pl.program_id(0)

    @pl.when(n == 0)
    def _():
        m_sc[...] = jnp.full_like(m_sc, -jnp.inf)
        l_sc[...] = jnp.zeros_like(l_sc)
        acc_sc[...] = jnp.zeros_like(acc_sc)

    h = h_ref[...].astype(jnp.float32)        # (TN, Hp), tile-local f32
    mem = mem_ref[...].astype(jnp.float32)    # (G, TN) 0/1 membership

    # Gate on the VPU + XLU (broadcast multiply + lane reduce); avoids a
    # lane-sparse (Hp,1) MXU matmul.
    gate = jnp.sum(h * gw_ref[...], axis=-1, keepdims=True) + gb_ref[...]  # (TN,1)

    # Online softmax with a single running global max (shift-invariance makes
    # a shared shift valid per graph).  Padded nodes are excluded by mem.
    m_prev = m_sc[...]
    m_new = jnp.maximum(m_prev, jnp.max(gate, axis=0, keepdims=True))
    scale = jnp.exp(m_prev - m_new)
    e = jnp.exp(gate - m_new)                                              # (TN,1)
    l_sc[...] = scale * l_sc[...] + jnp.dot(mem, e,
                                            preferred_element_type=jnp.float32)
    acc_sc[...] = scale * acc_sc[...] + jnp.dot(mem, e * h,
                                                preferred_element_type=jnp.float32)
    m_sc[...] = m_new

    @pl.when(n == pl.num_programs(0) - 1)
    def _():
        pooled = acc_sc[...] / l_sc[...]                 # exact divide on tiny (G,Hp)

        # lin1 + ReLU (tiny tail matmuls kept in f32).
        z = jnp.maximum(
            jnp.dot(pooled, l1w_ref[...], preferred_element_type=jnp.float32)
            + l1b_ref[...], 0.0)

        # dropout(p=0.5) in eval mode is the identity.
        # TODO(synk): training-mode dropout would need pltpu.prng_random_bits masking.

        out_ref[...] = (jnp.dot(z, l2w_ref[...], preferred_element_type=jnp.float32)
                        + l2b_ref[...])


def pool_and_head(h, mem, params, *, tn):
    npad, hp = h.shape
    g = mem.shape[0]
    return pl.pallas_call(
        _pool_head_kernel,
        out_shape=jax.ShapeDtypeStruct((g, 1), jnp.float32),
        grid_spec=pltpu.PrefetchScalarGridSpec(
            num_scalar_prefetch=0,
            grid=(npad // tn,),
            in_specs=[
                pl.BlockSpec((tn, hp), lambda n: (n, 0)),   # h node tile (bf16)
                pl.BlockSpec((g, tn), lambda n: (0, n)),    # membership tile (bf16)
                pl.BlockSpec((1, hp), lambda n: (0, 0)),    # gate weight (row)
                pl.BlockSpec((1, 1), lambda n: (0, 0)),     # gate bias
                pl.BlockSpec((hp, hp), lambda n: (0, 0)),   # lin1 W
                pl.BlockSpec((1, hp), lambda n: (0, 0)),    # lin1 b
                pl.BlockSpec((hp, 1), lambda n: (0, 0)),    # lin2 W
                pl.BlockSpec((1, 1), lambda n: (0, 0)),     # lin2 b
            ],
            out_specs=pl.BlockSpec((g, 1), lambda n: (0, 0)),
            scratch_shapes=[pltpu.VMEM((1, 1), jnp.float32),   # running max
                            pltpu.VMEM((g, 1), jnp.float32),   # softmax denom
                            pltpu.VMEM((g, hp), jnp.float32)], # pooled accumulator
        ),
        compiler_params=pltpu.CompilerParams(
            dimension_semantics=("arbitrary",)),
    )(h, mem, params["gw"], params["gb"], params["l1w"], params["l1b"],
      params["l2w"], params["l2b"])


# ---------------------------------------------------------------------------
# Wrapper glue
# ---------------------------------------------------------------------------
def precompute_dense_graph(edge_index, batch_index, num_nodes, num_graphs):
    """Densify the graph ONCE (cacheable across forward calls)."""
    src, dst = edge_index[0], edge_index[1]
    adj = jnp.zeros((num_nodes, num_nodes), jnp.float32).at[dst, src].add(1.0)
    deg = jnp.maximum(adj.sum(axis=1, keepdims=True), 1.0)
    adj = adj / deg                      # PyG SAGEConv 'mean' aggregation

    npad = _round_up(num_nodes, 128)
    adj_p = jnp.zeros((npad, npad), jnp.float32).at[:num_nodes, :num_nodes].set(adj)
    mem = (batch_index[None, :] == jnp.arange(num_graphs)[:, None]).astype(jnp.float32)
    mem_p = jnp.zeros((num_graphs, npad), jnp.float32).at[:, :num_nodes].set(mem)
    # TODO(synk): for large sparse graphs, replace the dense adj with a
    # block-sparse tile list consumed via scalar prefetch.
    return adj_p.astype(jnp.bfloat16), mem_p.astype(jnp.bfloat16), npad


def gan_forward(x, adj, mem, params, *, tm, tk, vmem_budget):
    npad = adj.shape[0]
    n, f = x.shape
    xp = jnp.zeros((npad, f), jnp.float32).at[:n, :].set(x.astype(jnp.float32))
    xp = xp.astype(jnp.bfloat16)

    # Layer 1:  h1 = relu(adj @ (x @ W1_l) + (x @ W1_r + b1))
    xw1, root1 = input_proj(xp, params["w1l"], params["w1r"], params["b1"], tm=tm)
    h1 = sage_agg(adj, xw1, root1, tm=tm, tk=tk, vmem_budget=vmem_budget)

    # Layer 2 (num_layers - 1 == 1 extra conv)
    xw2, root2 = input_proj(h1, params["w2l"], params["w2r"], params["b2"], tm=tm)
    h2 = sage_agg(adj, xw2, root2, tm=tm, tk=tk, vmem_budget=vmem_budget)

    # Attention pooling + lin1 + dropout(eval) + lin2
    return pool_and_head(h2, mem, params, tn=tk)


def init_params(key, num_features, hidden, hp):
    """Weights zero-padded on the hidden axis to hp (=128) for lane-dense I/O."""
    ks = jax.random.split(key, 12)
    s = 0.1

    def pad_to(w, rows, cols):
        return jnp.zeros((rows, cols), jnp.float32).at[:w.shape[0], :w.shape[1]].set(w)

    w1l = s * jax.random.normal(ks[0], (num_features, hidden), jnp.float32)
    w1r = s * jax.random.normal(ks[1], (num_features, hidden), jnp.float32)
    b1 = s * jax.random.normal(ks[2], (1, hidden), jnp.float32)
    w2l = s * jax.random.normal(ks[3], (hidden, hidden), jnp.float32)
    w2r = s * jax.random.normal(ks[4], (hidden, hidden), jnp.float32)
    b2 = s * jax.random.normal(ks[5], (1, hidden), jnp.float32)
    gw = s * jax.random.normal(ks[6], (hidden, 1), jnp.float32)
    gb = s * jax.random.normal(ks[7], (1, 1), jnp.float32)
    l1w = s * jax.random.normal(ks[8], (hidden, hidden), jnp.float32)
    l1b = s * jax.random.normal(ks[9], (1, hidden), jnp.float32)
    l2w = s * jax.random.normal(ks[10], (hidden, 1), jnp.float32)
    l2b = s * jax.random.normal(ks[11], (1, 1), jnp.float32)

    return {
        # SAGEConv 1
        "w1l": pad_to(w1l, num_features, hp).astype(jnp.bfloat16),
        "w1r": pad_to(w1r, num_features, hp).astype(jnp.bfloat16),
        "b1": pad_to(b1, 1, hp),
        # SAGEConv 2
        "w2l": pad_to(w2l, hp, hp).astype(jnp.bfloat16),
        "w2r": pad_to(w2r, hp, hp).astype(jnp.bfloat16),
        "b2": pad_to(b2, 1, hp),
        # Attention gate: Linear(hidden, 1), stored as a row for the VPU gate
        "gw": pad_to(gw.T, 1, hp),
        "gb": gb,
        # lin1: Linear(hidden, hidden)
        "l1w": pad_to(l1w, hp, hp),
        "l1b": pad_to(l1b, 1, hp),
        # lin2: Linear(hidden, 1)
        "l2w": pad_to(l2w, hp, 1),
        "l2b": l2b,
    }


if __name__ == "__main__":
    key = jax.random.PRNGKey(0)
    num_features, hidden = 4, 32          # cf['hidden']=32, cf['num_layers']=2
    num_nodes, num_graphs, num_edges = 16, 2, 40
    hp = _round_up(hidden, 128)           # lane-dense padded hidden

    k_x, k_e, k_p = jax.random.split(key, 3)
    x = jax.random.normal(k_x, (num_nodes, num_features), jnp.float32)

    # Random edges; nodes 0..7 -> graph 0, nodes 8..15 -> graph 1 (edges in-graph).
    ks_, kd_ = jax.random.split(k_e)
    src = jax.random.randint(ks_, (num_edges,), 0, num_nodes // 2)
    dst = jax.random.randint(kd_, (num_edges,), 0, num_nodes // 2)
    half = num_edges // 2
    offset = jnp.where(jnp.arange(num_edges) < half, 0, num_nodes // 2)
    edge_index = jnp.stack([src + offset, dst + offset], axis=0).astype(jnp.int32)

    batch_index = jnp.concatenate([
        jnp.zeros((num_nodes // 2,), jnp.int32),
        jnp.ones((num_nodes // 2,), jnp.int32),
    ])

    params = init_params(k_p, num_features, hidden, hp)

    # Dense adjacency / membership built once, reused across forwards.
    adj, mem, npad = precompute_dense_graph(edge_index, batch_index,
                                            num_nodes, num_graphs)

    # Generation-aware tile sizes and VMEM budget.
    vmem_budget, tm_target, tk_target = _hw_config()
    tm = _pick_tile(npad, tm_target)
    tk = _pick_tile(npad, tk_target)

    out = gan_forward(x, adj, mem, params, tm=tm, tk=tk, vmem_budget=vmem_budget)
    jax.block_until_ready(out)
    assert out.shape == (num_graphs, 1)
    print("KERNEL_OK")
</pallas_src>

<mosaic_0001>
module attributes {stable_mosaic.version = 11 : i64} {
  func.func @_input_proj_kernel(%arg0: i32, %arg1: memref<128x4xbf16, #tpu.memory_space<vmem>>, %arg2: memref<4x128xbf16, #tpu.memory_space<vmem>>, %arg3: memref<4x128xbf16, #tpu.memory_space<vmem>>, %arg4: memref<1x128xf32, #tpu.memory_space<vmem>>, %arg5: memref<128x128xbf16, #tpu.memory_space<vmem>>, %arg6: memref<128x128xf32, #tpu.memory_space<vmem>>) attributes {dimension_semantics = [#tpu.dimension_semantics<parallel>], iteration_bounds = array<i64: 1>, scalar_prefetch = 0 : i64, scratch_operands = 0 : i64, tpu.core_type = #tpu.core_type<tc>, window_params = [{transform_indices = @transform_0, window_bounds = array<i64: 128, 4>}, {pipeline_mode = #tpu.pipeline_mode<synchronous>, transform_indices = @transform_1, window_bounds = array<i64: 4, 128>}, {pipeline_mode = #tpu.pipeline_mode<synchronous>, transform_indices = @transform_2, window_bounds = array<i64: 4, 128>}, {pipeline_mode = #tpu.pipeline_mode<synchronous>, transform_indices = @transform_3, window_bounds = array<i64: 1, 128>}, {transform_indices = @transform_4, window_bounds = array<i64: 128, 128>}, {transform_indices = @transform_5, window_bounds = array<i64: 128, 128>}]} {
    %c0 = arith.constant 0 : index
    %c0_0 = arith.constant 0 : index
    %0 = vector.load %arg1[%c0, %c0_0] : memref<128x4xbf16, #tpu.memory_space<vmem>>, vector<128x4xbf16>
    %c0_1 = arith.constant 0 : index
    %c0_2 = arith.constant 0 : index
    %1 = vector.load %arg2[%c0_1, %c0_2] : memref<4x128xbf16, #tpu.memory_space<vmem>>, vector<4x128xbf16>
    %cst = arith.constant dense<0.000000e+00> : vector<128x128xf32>
    %2 = tpu.matmul %0, %1, %cst {dimension_numbers = #tpu.dot_dimension_numbers<[1], [0], [0], [1], [0, 0, 1, 1], [], []>} : vector<128x4xbf16>, vector<4x128xbf16>, vector<128x128xf32> -> vector<128x128xf32>
    %3 = arith.truncf %2 : vector<128x128xf32> to vector<128x128xbf16>
    %c0_3 = arith.constant 0 : index
    %c0_4 = arith.constant 0 : index
    %4 = vector.load %arg5[%c0_3, %c0_4] : memref<128x128xbf16, #tpu.memory_space<vmem>>, vector<128x128xbf16>
    tpu.vector_store %arg5[%c0_3, %c0_4], %3 {strides = array<i32>} : memref<128x128xbf16, #tpu.memory_space<vmem>>, vector<128x128xbf16>,
    %c0_5 = arith.constant 0 : index
    %c0_6 = arith.constant 0 : index
    %5 = vector.load %arg3[%c0_5, %c0_6] : memref<4x128xbf16, #tpu.memory_space<vmem>>, vector<4x128xbf16>
    %cst_7 = arith.constant dense<0.000000e+00> : vector<128x128xf32>
    %6 = tpu.matmul %0, %5, %cst_7 {dimension_numbers = #tpu.dot_dimension_numbers<[1], [0], [0], [1], [0, 0, 1, 1], [], []>} : vector<128x4xbf16>, vector<4x128xbf16>, vector<128x128xf32> -> vector<128x128xf32>
    %c0_8 = arith.constant 0 : index
    %c0_9 = arith.constant 0 : index
    %7 = vector.load %arg4[%c0_8, %c0_9] : memref<1x128xf32, #tpu.memory_space<vmem>>, vector<1x128xf32>
    %8 = vector.broadcast %7 : vector<1x128xf32> to vector<128x128xf32>
    %9 = arith.addf %6, %8 : vector<128x128xf32>
    %c0_10 = arith.constant 0 : index
    %c0_11 = arith.constant 0 : index
    %10 = vector.load %arg6[%c0_10, %c0_11] : memref<128x128xf32, #tpu.memory_space<vmem>>, vector<128x128xf32>
    tpu.vector_store %arg6[%c0_10, %c0_11], %9 {strides = array<i32>} : memref<128x128xf32, #tpu.memory_space<vmem>>, vector<128x128xf32>,
    return
  }
  func.func @transform_0(%arg0: i32) -> (i32, i32) {
    %c0_i32 = arith.constant 0 : i32
    %c0_i32_0 = arith.constant 0 : i32
    return %arg0, %c0_i32 : i32, i32
  }
  func.func @transform_1(%arg0: i32) -> (i32, i32) {
    %c0_i32 = arith.constant 0 : i32
    %c0_i32_0 = arith.constant 0 : i32
    %c0_i32_1 = arith.constant 0 : i32
    return %c0_i32, %c0_i32_0 : i32, i32
  }
  func.func @transform_2(%arg0: i32) -> (i32, i32) {
    %c0_i32 = arith.constant 0 : i32
    %c0_i32_0 = arith.constant 0 : i32
    %c0_i32_1 = arith.constant 0 : i32
    return %c0_i32, %c0_i32_0 : i32, i32
  }
  func.func @transform_3(%arg0: i32) -> (i32, i32) {
    %c0_i32 = arith.constant 0 : i32
    %c0_i32_0 = arith.constant 0 : i32
    %c0_i32_1 = arith.constant 0 : i32
    return %c0_i32, %c0_i32_0 : i32, i32
  }
  func.func @transform_4(%arg0: i32) -> (i32, i32) {
    %c0_i32 = arith.constant 0 : i32
    %c0_i32_0 = arith.constant 0 : i32
    return %arg0, %c0_i32 : i32, i32
  }
  func.func @transform_5(%arg0: i32) -> (i32, i32) {
    %c0_i32 = arith.constant 0 : i32
    %c0_i32_0 = arith.constant 0 : i32
    return %arg0, %c0_i32 : i32, i32
  }
}

</mosaic_0001>

<llo_original>
// kernel: tpu_custom_call.1
$region0: #{tpu_custom_call.1}
  #allocation0 [shape = 'u32[]', space=smem, size = 0x4, offset = 0x4, fixed_abs, tag = 'smem constant byte address 0x4 - core index']
  #allocation1 [shape = 'u32[144,128]{1,0:T(1,128)}', space=vmem, size = 0x12000, scoped, tag = 'internal scratch']
  %s0 = inlined_call_operand.vmem [shape: bf16[128,4], index: 0, kind: input, shape index: {}]
  %s1 = inlined_call_operand.vmem [shape: bf16[4,128], index: 1, kind: input, shape index: {}]
  %s2 = inlined_call_operand.vmem [shape: bf16[4,128], index: 2, kind: input, shape index: {}]
  %s3 = inlined_call_operand.vmem [shape: f32[1,128], index: 3, kind: input, shape index: {}]
  %s4 = inlined_call_operand.hbm [shape: bf16[128,128], index: 4, kind: output, shape index: {0}]
  %s5 = inlined_call_operand.hbm [shape: f32[128,128], index: 5, kind: output, shape index: {1}]
  %6 = xla_tuple %s4, %s5
  %s7 = sld [smem:[#allocation0]]
  $region34: #{tpu_custom_call.1} parent=0
    _
  %s9 = ssub.s32 1, %s7
  %s10 = scalar_select 0, %s9, %s7
  $region1: #{tpu_custom_call.1} parent=0
    #allocation2 [shape = 'u8[32768]{0}', space=vmem, size = 0x8000, scoped, tag = 'output window, operand 0, single buffered']
    #allocation3 [shape = 's32[1]{0}', space=sflag, size = 0x4, scoped, tag = 'scoped memory for tpu_custom_call.1']
    #allocation4 [shape = 'u8[65536]{0}', space=vmem, size = 0x10000, scoped, tag = 'output window, operand 1, single buffered']
    #allocation5 [shape = 's32[1]{0}', space=sflag, size = 0x4, scoped, tag = 'scoped memory for tpu_custom_call.1']
    %11 = vsyncpa [#allocation3], 0
    %12 = vsyncpa [#allocation5], 0
    // Predicated region
    $region2: #{tpu_custom_call.1} parent=1 // pred_check
      _
    $region3: #{tpu_custom_call.1} parent=1 // pred_check_branch
      %14 = sbr.rel (0) target = $region5
    $region4: #{tpu_custom_call.1} parent=1 // pred_region
      _
    $region5: #{tpu_custom_call.1} parent=1 // pred_fallthru
      _
    // Predicated region
    $region6: #{tpu_custom_call.1} parent=1 // pred_check
      _
    $region7: #{tpu_custom_call.1} parent=1 // pred_check_branch
      %16 = sbr.rel (0) target = $region9
    $region8: #{tpu_custom_call.1} parent=1 // pred_region
      _
    $region9: #{tpu_custom_call.1} parent=1 // pred_fallthru
      _
    // Predicated region
    $region10: #{tpu_custom_call.1} parent=1 // pred_check
      _
    $region11: #{tpu_custom_call.1} parent=1 // pred_check_branch
      %18 = sbr.rel (0) target = $region13
    $region12: #{tpu_custom_call.1} parent=1 // pred_region
      _
    $region13: #{tpu_custom_call.1} parent=1 // pred_fallthru
      _
    // Predicated region
    $region14: #{tpu_custom_call.1} parent=1 // pred_check
      _
    $region15: #{tpu_custom_call.1} parent=1 // pred_check_branch
      %20 = sbr.rel (0) target = $region17
    $region16: #{tpu_custom_call.1} parent=1 // pred_region
      _
    $region17: #{tpu_custom_call.1} parent=1 // pred_fallthru
      _
    %v22 = vld [vmem:[%s0] sm:$0xf]
    %v23 = vld [vmem:[%s0 + $0x4] sm:$0xf]
    %v24 = vld [vmem:[%s0 + $0x8] sm:$0xf]
    %v25 = vld [vmem:[%s0 + $0xc] sm:$0xf]
    %v26 = vld [vmem:[%s0 + $0x10] sm:$0xf]
    %v27 = vld [vmem:[%s0 + $0x14] sm:$0xf]
    %v28 = vld [vmem:[%s0 + $0x18] sm:$0xf]
    %v29 = vld [vmem:[%s0 + $0x1c] sm:$0xf]
    %v30 = vld [vmem:[%s0 + $0x20] sm:$0xf]
    %v31 = vld [vmem:[%s0 + $0x24] sm:$0xf]
    %v32 = vld [vmem:[%s0 + $0x28] sm:$0xf]
    %v33 = vld [vmem:[%s0 + $0x2c] sm:$0xf]
    %v34 = vld [vmem:[%s0 + $0x30] sm:$0xf]
    %v35 = vld [vmem:[%s0 + $0x34] sm:$0xf]
    %v36 = vld [vmem:[%s0 + $0x38] sm:$0xf]
    %v37 = vld [vmem:[%s0 + $0x3c] sm:$0xf]
    %v38 = vld [vmem:[%s1] sm:$0x3]
    %v55 = vunpack.c.l.b16 %v22
    %v56 = vunpack.c.l.b16 %v23
    %v57 = vunpack.c.l.b16 %v24
    %v58 = vunpack.c.l.b16 %v25
    %v59 = vunpack.c.l.b16 %v26
    %v60 = vunpack.c.l.b16 %v27
    %v61 = vunpack.c.l.b16 %v28
    %v62 = vunpack.c.l.b16 %v29
    %v63 = vunpack.c.l.b16 %v30
    %v64 = vunpack.c.l.b16 %v31
    %v65 = vunpack.c.l.b16 %v32
    %v66 = vunpack.c.l.b16 %v33
    %v67 = vunpack.c.l.b16 %v34
    %v68 = vunpack.c.l.b16 %v35
    %v69 = vunpack.c.l.b16 %v36
    %v70 = vunpack.c.l.b16 %v37
    %v71 = vpack.c.b16 %v56, %v55
    %v72 = vpack.c.b16 %v58, %v57
    %v73 = vpack.c.b16 %v60, %v59
    %v74 = vpack.c.b16 %v62, %v61
    %v75 = vpack.c.b16 %v64, %v63
    %v76 = vpack.c.b16 %v66, %v65
    %v77 = vpack.c.b16 %v68, %v67
    %v78 = vpack.c.b16 %v70, %v69
    %vm79 = vcmask 31744
    %v81 = vsel %vm79, %v71, 0
    %v84 = vsel %vm79, %v72, 0
    %v87 = vsel %vm79, %v73, 0
    %v90 = vsel %vm79, %v74, 0
    %v93 = vsel %vm79, %v75, 0
    %v96 = vsel %vm79, %v76, 0
    %v99 = vsel %vm79, %v77, 0
    %v102 = vsel %vm79, %v78, 0
    %vm104 = vcmask 1041408
    %v106 = vsel %vm104, %v38, 0
    %108 = vmatprep.subr.bf16.mxu0 0
    %109 = vmatpush1.bf16.msra.mxu0 %v106
    %110 = vmatprep.subr.bf16.mxu0 0
    %111 = vmatpush1.bf16.msra.mxu0 0
    %112 = vmatprep.subr.bf16.mxu0 0
    %113 = vmatpush1.bf16.msra.mxu0 0
    %114 = vmatprep.subr.bf16.mxu0 0
    %115 = vmatpush1.bf16.msra.mxu0 0
    %116 = vmatprep.subr.bf16.mxu0 0
    %117 = vmatpush1.bf16.msra.mxu0 0
    %118 = vmatprep.subr.bf16.mxu0 0
    %119 = vmatpush1.bf16.msra.mxu0 0
    %120 = vmatprep.subr.bf16.mxu0 0
    %121 = vmatpush1.bf16.msra.mxu0 0
    %122 = vmatprep.subr.bf16.mxu0 0
    %123 = vmatpush1.bf16.msra.mxu0 0
    %124 = vmatprep.subr.bf16.mxu0 0
    %125 = vmatpush1.bf16.msra.mxu0 0
    %126 = vmatprep.subr.bf16.mxu0 0
    %127 = vmatpush1.bf16.msra.mxu0 0
    %128 = vmatprep.subr.bf16.mxu0 0
    %129 = vmatpush1.bf16.msra.mxu0 0
    %130 = vmatprep.subr.bf16.mxu0 0
    %131 = vmatpush1.bf16.msra.mxu0 0
    %132 = vmatprep.subr.bf16.mxu0 0
    %133 = vmatpush1.bf16.msra.mxu0 0
    %134 = vmatprep.subr.bf16.mxu0 0
    %135 = vmatpush1.bf16.msra.mxu0 0
    %136 = vmatprep.subr.bf16.mxu0 0
    %137 = vmatpush1.bf16.msra.mxu0 0
    %138 = vmatprep.subr.bf16.mxu0 0
    %139 = vmatpush1.bf16.msra.mxu0 0
    %140 = vmatprep.mubr.bf16.mxu0 0
    %141 = vmatmul.mubr.bf16.gmra.mrb[0].mxu0 %v81
    %v142 = vpop.f32.mrb[0].mxu0
    %v143 = vadd.f32 0.0, %v142
    %v144 = vpop.f32.mrb[0].mxu0
    %v145 = vpop.f32.mrb[0].mxu0
    %v146 = vadd.f32 0.0, %v145
    %v147 = vpop.f32.mrb[0].mxu0
    %148 = vmatprep.mubr.bf16.mxu0 0
    %149 = vmatmul.mubr.bf16.gmra.mrb[0].mxu0 %v84
    %v150 = vpop.f32.mrb[0].mxu0
    %v151 = vadd.f32 0.0, %v150
    %v152 = vpop.f32.mrb[0].mxu0
    %v153 = vpop.f32.mrb[0].mxu0
    %v154 = vadd.f32 0.0, %v153
    %v155 = vpop.f32.mrb[0].mxu0
    %156 = vmatprep.mubr.bf16.mxu0 0
    %157 = vmatmul.mubr.bf16.gmra.mrb[0].mxu0 %v87
    %v158 = vpop.f32.mrb[0].mxu0
    %v159 = vadd.f32 0.0, %v158
    %v160 = vpop.f32.mrb[0].mxu0
    %v161 = vpop.f32.mrb[0].mxu0
    %v162 = vadd.f32 0.0, %v161
    %v163 = vpop.f32.mrb[0].mxu0
    %164 = vmatprep.mubr.bf16.mxu0 0
    %165 = vmatmul.mubr.bf16.gmra.mrb[0].mxu0 %v90
    %v166 = vpop.f32.mrb[0].mxu0
    %v167 = vadd.f32 0.0, %v166
    %v168 = vpop.f32.mrb[0].mxu0
    %v169 = vpop.f32.mrb[0].mxu0
    %v170 = vadd.f32 0.0, %v169
    %v171 = vpop.f32.mrb[0].mxu0
    %172 = vmatprep.mubr.bf16.mxu0 0
    %173 = vmatmul.mubr.bf16.gmra.mrb[0].mxu0 %v93
    %v174 = vpop.f32.mrb[0].mxu0
    %v175 = vadd.f32 0.0, %v174
    %v176 = vpop.f32.mrb[0].mxu0
    %v177 = vpop.f32.mrb[0].mxu0
    %v178 = vadd.f32 0.0, %v177
    %v179 = vpop.f32.mrb[0].mxu0
    %180 = vmatprep.mubr.bf16.mxu0 0
    %181 = vmatmul.mubr.bf16.gmra.mrb[0].mxu0 %v96
    %v182 = vpop.f32.mrb[0].mxu0
    %v183 = vadd.f32 0.0, %v182
    %v184 = vpop.f32.mrb[0].mxu0
    %v185 = vpop.f32.mrb[0].mxu0
    %v186 = vadd.f32 0.0, %v185
    %v187 = vpop.f32.mrb[0].mxu0
    %188 = vmatprep.mubr.bf16.mxu0 0
    %189 = vmatmul.mubr.bf16.gmra.mrb[0].mxu0 %v99
    %v190 = vpop.f32.mrb[0].mxu0
    %v191 = vadd.f32 0.0, %v190
    %v192 = vpop.f32.mrb[0].mxu0
    %v193 = vpop.f32.mrb[0].mxu0
    %v194 = vadd.f32 0.0, %v193
    %v195 = vpop.f32.mrb[0].mxu0
    %196 = vmatprep.mubr.bf16.mxu0 0
    %197 = vmatmul.mubr.bf16.gmra.mrb[0].mxu0 %v102
    %v198 = vpop.f32.mrb[0].mxu0
    %v199 = vadd.f32 0.0, %v198
    %v200 = vpop.f32.mrb[0].mxu0
    %v201 = vpop.f32.mrb[0].mxu0
    %v202 = vadd.f32 0.0, %v201
    %v203 = vpop.f32.mrb[0].mxu0
    %204 = vdwg.mxu0
    %v205 = vpack.c.bf16 %v146, %v143
    %v206 = vpack.c.bf16 %v154, %v151
    %v207 = vpack.c.bf16 %v162, %v159
    %v208 = vpack.c.bf16 %v170, %v167
    %v209 = vpack.c.bf16 %v178, %v175
    %v210 = vpack.c.bf16 %v186, %v183
    %v211 = vpack.c.bf16 %v194, %v191
    %v212 = vpack.c.bf16 %v202, %v199
    %v221 = vunpack.c.l.b16 %v205
    %v222 = vunpack.c.h.b16 %v205
    %v223 = vunpack.c.l.b16 %v206
    %v224 = vunpack.c.h.b16 %v206
    %v225 = vunpack.c.l.b16 %v207
    %v226 = vunpack.c.h.b16 %v207
    %v227 = vunpack.c.l.b16 %v208
    %v228 = vunpack.c.h.b16 %v208
    %v229 = vunpack.c.l.b16 %v209
    %v230 = vunpack.c.h.b16 %v209
    %v231 = vunpack.c.l.b16 %v210
    %v232 = vunpack.c.h.b16 %v210
    %v233 = vunpack.c.l.b16 %v211
    %v234 = vunpack.c.h.b16 %v211
    %v235 = vunpack.c.l.b16 %v212
    %v236 = vunpack.c.h.b16 %v212
    %v237 = vpack.c.b16 %v221, %v221
    %v238 = vpack.c.b16 %v222, %v222
    %v239 = vpack.c.b16 %v223, %v223
    %v240 = vpack.c.b16 %v224, %v224
    %v241 = vpack.c.b16 %v225, %v225
    %v242 = vpack.c.b16 %v226, %v226
    %v243 = vpack.c.b16 %v227, %v227
    %v244 = vpack.c.b16 %v228, %v228
    %v245 = vpack.c.b16 %v229, %v229
    %v246 = vpack.c.b16 %v230, %v230
    %v247 = vpack.c.b16 %v231, %v231
    %v248 = vpack.c.b16 %v232, %v232
    %v249 = vpack.c.b16 %v233, %v233
    %v250 = vpack.c.b16 %v234, %v234
    %v251 = vpack.c.b16 %v235, %v235
    %v252 = vpack.c.b16 %v236, %v236
    %269 = vst [vmem:[#allocation2] sm:$0xf] %v237
    %270 = vst [vmem:[#allocation2 + $0x4] sm:$0xf] %v238
    %271 = vst [vmem:[#allocation2 + $0x8] sm:$0xf] %v239
    %272 = vst [vmem:[#allocation2 + $0xc] sm:$0xf] %v240
    %273 = vst [vmem:[#allocation2 + $0x10] sm:$0xf] %v241
    %274 = vst [vmem:[#allocation2 + $0x14] sm:$0xf] %v242
    %275 = vst [vmem:[#allocation2 + $0x18] sm:$0xf] %v243
    %276 = vst [vmem:[#allocation2 + $0x1c] sm:$0xf] %v244
    %277 = vst [vmem:[#allocation2 + $0x20] sm:$0xf] %v245
    %278 = vst [vmem:[#allocation2 + $0x24] sm:$0xf] %v246
    %279 = vst [vmem:[#allocation2 + $0x28] sm:$0xf] %v247
    %280 = vst [vmem:[#allocation2 + $0x2c] sm:$0xf] %v248
    %281 = vst [vmem:[#allocation2 + $0x30] sm:$0xf] %v249
    %282 = vst [vmem:[#allocation2 + $0x34] sm:$0xf] %v250
    %283 = vst [vmem:[#allocation2 + $0x38] sm:$0xf] %v251
    %284 = vst [vmem:[#allocation2 + $0x3c] sm:$0xf] %v252
    %v285 = vld [vmem:[%s2] sm:$0x3]
    %v286 = vld [vmem:[%s3] sm:$0x1]
    %v288 = vlaneseq
    %v289 = vshrl.u32 %v288, 7
    %v290 = vsub.s32 0, %v289
    %v291 = vrot.slane %v286, %v290
    %v294 = vsel %vm104, %v285, 0
    %296 = vmatprep.subr.bf16.mxu0 0
    %297 = vmatpush1.bf16.msra.mxu0 %v294
    %298 = vmatprep.subr.bf16.mxu0 0
    %299 = vmatpush1.bf16.msra.mxu0 0
    %300 = vmatprep.subr.bf16.mxu0 0
    %301 = vmatpush1.bf16.msra.mxu0 0
    %302 = vmatprep.subr.bf16.mxu0 0
    %303 = vmatpush1.bf16.msra.mxu0 0
    %304 = vmatprep.subr.bf16.mxu0 0
    %305 = vmatpush1.bf16.msra.mxu0 0
    %306 = vmatprep.subr.bf16.mxu0 0
    %307 = vmatpush1.bf16.msra.mxu0 0
    %308 = vmatprep.subr.bf16.mxu0 0
    %309 = vmatpush1.bf16.msra.mxu0 0
    %310 = vmatprep.subr.bf16.mxu0 0
    %311 = vmatpush1.bf16.msra.mxu0 0
    %312 = vmatprep.subr.bf16.mxu0 0
    %313 = vmatpush1.bf16.msra.mxu0 0
    %314 = vmatprep.subr.bf16.mxu0 0
    %315 = vmatpush1.bf16.msra.mxu0 0
    %316 = vmatprep.subr.bf16.mxu0 0
    %317 = vmatpush1.bf16.msra.mxu0 0
    %318 = vmatprep.subr.bf16.mxu0 0
    %319 = vmatpush1.bf16.msra.mxu0 0
    %320 = vmatprep.subr.bf16.mxu0 0
    %321 = vmatpush1.bf16.msra.mxu0 0
    %322 = vmatprep.subr.bf16.mxu0 0
    %323 = vmatpush1.bf16.msra.mxu0 0
    %324 = vmatprep.subr.bf16.mxu0 0
    %325 = vmatpush1.bf16.msra.mxu0 0
    %326 = vmatprep.subr.bf16.mxu0 0
    %327 = vmatpush1.bf16.msra.mxu0 0
    %328 = vmatprep.mubr.bf16.mxu0 0
    %329 = vmatmul.mubr.bf16.gmra.mrb[0].mxu0 %v81
    %v330 = vpop.f32.mrb[0].mxu0
    %v331 = vadd.f32 %v291, %v330
    %v332 = vpop.f32.mrb[0].mxu0
    %v333 = vpop.f32.mrb[0].mxu0
    %v334 = vadd.f32 %v291, %v333
    %v335 = vpop.f32.mrb[0].mxu0
    %336 = vmatprep.mubr.bf16.mxu0 0
    %337 = vmatmul.mubr.bf16.gmra.mrb[0].mxu0 %v84
    %v338 = vpop.f32.mrb[0].mxu0
    %v339 = vadd.f32 %v291, %v338
    %v340 = vpop.f32.mrb[0].mxu0
    %v341 = vpop.f32.mrb[0].mxu0
    %v342 = vadd.f32 %v291, %v341
    %v343 = vpop.f32.mrb[0].mxu0
    %344 = vmatprep.mubr.bf16.mxu0 0
    %345 = vmatmul.mubr.bf16.gmra.mrb[0].mxu0 %v87
    %v346 = vpop.f32.mrb[0].mxu0
    %v347 = vadd.f32 %v291, %v346
    %v348 = vpop.f32.mrb[0].mxu0
    %v349 = vpop.f32.mrb[0].mxu0
    %v350 = vadd.f32 %v291, %v349
    %v351 = vpop.f32.mrb[0].mxu0
    %352 = vmatprep.mubr.bf16.mxu0 0
    %353 = vmatmul.mubr.bf16.gmra.mrb[0].mxu0 %v90
    %v354 = vpop.f32.mrb[0].mxu0
    %v355 = vadd.f32 %v291, %v354
    %v356 = vpop.f32.mrb[0].mxu0
    %v357 = vpop.f32.mrb[0].mxu0
    %v358 = vadd.f32 %v291, %v357
    %v359 = vpop.f32.mrb[0].mxu0
    %360 = vmatprep.mubr.bf16.mxu0 0
    %361 = vmatmul.mubr.bf16.gmra.mrb[0].mxu0 %v93
    %v362 = vpop.f32.mrb[0].mxu0
    %v363 = vadd.f32 %v291, %v362
    %v364 = vpop.f32.mrb[0].mxu0
    %v365 = vpop.f32.mrb[0].mxu0
    %v366 = vadd.f32 %v291, %v365
    %v367 = vpop.f32.mrb[0].mxu0
    %368 = vmatprep.mubr.bf16.mxu0 0
    %369 = vmatmul.mubr.bf16.gmra.mrb[0].mxu0 %v96
    %v370 = vpop.f32.mrb[0].mxu0
    %v371 = vadd.f32 %v291, %v370
    %v372 = vpop.f32.mrb[0].mxu0
    %v373 = vpop.f32.mrb[0].mxu0
    %v374 = vadd.f32 %v291, %v373
    %v375 = vpop.f32.mrb[0].mxu0
    %376 = vmatprep.mubr.bf16.mxu0 0
    %377 = vmatmul.mubr.bf16.gmra.mrb[0].mxu0 %v99
    %v378 = vpop.f32.mrb[0].mxu0
    %v379 = vadd.f32 %v291, %v378
    %v380 = vpop.f32.mrb[0].mxu0
    %v381 = vpop.f32.mrb[0].mxu0
    %v382 = vadd.f32 %v291, %v381
    %v383 = vpop.f32.mrb[0].mxu0
    %384 = vmatprep.mubr.bf16.mxu0 0
    %385 = vmatmul.mubr.bf16.gmra.mrb[0].mxu0 %v102
    %v386 = vpop.f32.mrb[0].mxu0
    %v387 = vadd.f32 %v291, %v386
    %v388 = vpop.f32.mrb[0].mxu0
    %v389 = vpop.f32.mrb[0].mxu0
    %v390 = vadd.f32 %v291, %v389
    %v391 = vpop.f32.mrb[0].mxu0
    %392 = vdwg.mxu0
    %393 = vst [vmem:[#allocation4] sm:$0xff] %v331
    %394 = vst [vmem:[#allocation4 + $0x8] sm:$0xff] %v334
    %395 = vst [vmem:[#allocation4 + $0x10] sm:$0xff] %v339
    %396 = vst [vmem:[#allocation4 + $0x18] sm:$0xff] %v342
    %397 = vst [vmem:[#allocation4 + $0x20] sm:$0xff] %v347
    %398 = vst [vmem:[#allocation4 + $0x28] sm:$0xff] %v350
    %399 = vst [vmem:[#allocation4 + $0x30] sm:$0xff] %v355
    %400 = vst [vmem:[#allocation4 + $0x38] sm:$0xff] %v358
    %401 = vst [vmem:[#allocation4 + $0x40] sm:$0xff] %v363
    %402 = vst [vmem:[#allocation4 + $0x48] sm:$0xff] %v366
    %403 = vst [vmem:[#allocation4 + $0x50] sm:$0xff] %v371
    %404 = vst [vmem:[#allocation4 + $0x58] sm:$0xff] %v374
    %405 = vst [vmem:[#allocation4 + $0x60] sm:$0xff] %v379
    %406 = vst [vmem:[#allocation4 + $0x68] sm:$0xff] %v382
    %407 = vst [vmem:[#allocation4 + $0x70] sm:$0xff] %v387
    %408 = vst [vmem:[#allocation4 + $0x78] sm:$0xff] %v390
    // Predicated region
    $region18: #{tpu_custom_call.1} parent=1 // pred_check
      _
    $region19: #{tpu_custom_call.1} parent=1 // pred_check_branch
      %410 = sbr.rel (0) target = $region21
    $region20: #{tpu_custom_call.1} parent=1 // pred_region
      %s412 = ssub.s32 1024, 1024
      %413 = vsyncadd [#allocation3], %s412
      %s414 = sshll.u32 [#allocation2], 4
      %s415 = int_to_ptr.vmem [resolvable:$true] %s414
      %420 = dma.vmem_to_hbm [thread:$0]  %s415, 1024, %s4, [#allocation3], 64, 64, 4
    $region21: #{tpu_custom_call.1} parent=1 // pred_fallthru
      _
    // Predicated region
    $region22: #{tpu_custom_call.1} parent=1 // pred_check
      _
    $region23: #{tpu_custom_call.1} parent=1 // pred_check_branch
      %422 = sbr.rel (0) target = $region25
    $region24: #{tpu_custom_call.1} parent=1 // pred_region
      %s424 = ssub.s32 2048, 2048
      %425 = vsyncadd [#allocation5], %s424
      %s426 = sshll.u32 [#allocation4], 4
      %s427 = int_to_ptr.vmem [resolvable:$true] %s426
      %432 = dma.vmem_to_hbm [thread:$0]  %s427, 2048, %s5, [#allocation5], 128, 128, 8
    $region25: #{tpu_custom_call.1} parent=1 // pred_fallthru
      _
    // Predicated region
    $region26: #{tpu_custom_call.1} parent=1 // pred_check
      _
    $region27: #{tpu_custom_call.1} parent=1 // pred_check_branch
      %434 = sbr.rel (0) target = $region29
    $region28: #{tpu_custom_call.1} parent=1 // pred_region
      %435 = dma.done [#allocation3], 1024
    $region29: #{tpu_custom_call.1} parent=1 // pred_fallthru
      _
    // Predicated region
    $region30: #{tpu_custom_call.1} parent=1 // pred_check
      _
    $region31: #{tpu_custom_call.1} parent=1 // pred_check_branch
      %437 = sbr.rel (0) target = $region33
    $region32: #{tpu_custom_call.1} parent=1 // pred_region
      %438 = dma.done [#allocation5], 2048
    $region33: #{tpu_custom_call.1} parent=1 // pred_fallthru
      _
    %439 = vsyncpa [#allocation3], 1
    %440 = vsyncpa [#allocation5], 1

</llo_original>
